<compile_context>
chip_gen: v7x
topology: tpu7x:2x2x1
jax: 0.10.0
libtpu: 0.0.40
codegen_flags: <defaults>
</compile_context>

<pallas_src>
import functools

import jax
import jax.numpy as jnp
from jax import lax
from jax.experimental import pallas as pl
from jax.experimental.pallas import tpu as pltpu

LANES = 128
SUBLANES = 8
NUM_CORES = 2           # v7x: 2 TCs/chip. Harmless (sequential) on v5e/v6e.
MAX_TILE_ROWS = 2048    # (2048, 128) f32 = 1 MiB per input block per step.


def _round_up(x, m):
    return ((x + m - 1) // m) * m


def _cdiv(a, b):
    return (a + b - 1) // b


def _dice_kernel(x_ref, t_ref, inter_ref, denom_ref, *,
                 n_elems, tile_rows, tiles_per_core, num_tiles, needs_mask):
    c = pl.program_id(0)                     # core axis ("parallel")
    i = pl.program_id(1)                     # reduction axis ("arbitrary")
    tile_idx = c * tiles_per_core + i        # global tile index
    folds = tile_rows // SUBLANES

    # Per-core output blocks double as resident accumulators along axis 1.
    @pl.when(i == 0)
    def _init():
        inter_ref[...] = jnp.zeros_like(inter_ref)
        denom_ref[...] = jnp.zeros_like(denom_ref)

    def _accumulate(valid=None):
        x = x_ref[...].astype(jnp.float32)
        t = t_ref[...].astype(jnp.float32)
        s = jax.nn.sigmoid(x)
        if valid is not None:
            s = jnp.where(valid, s, 0.0)
            t = jnp.where(valid, t, 0.0)
        # Fold (tile_rows, 128) -> (8, 128) in-register: pure VPU adds,
        # no VMEM RMW of big accumulators, no large cross-lane reduction.
        inter_ref[...] += (s * t).reshape(folds, SUBLANES, LANES).sum(axis=0)
        denom_ref[...] += (s + t).reshape(folds, SUBLANES, LANES).sum(axis=0)

    if needs_mask:
        last_tile = num_tiles - 1

        # Interior tiles: unmasked fast path.
        @pl.when(tile_idx < last_tile)
        def _fast():
            _accumulate()

        # Only the final valid tile can contain lane-pad zeros / edge-block
        # garbage; mask with the true element count there.
        @pl.when(tile_idx == last_tile)
        def _masked():
            row = lax.broadcasted_iota(jnp.int32, (tile_rows, LANES), 0)
            lane = lax.broadcasted_iota(jnp.int32, (tile_rows, LANES), 1)
            gidx = (last_tile * tile_rows + row) * LANES + lane
            _accumulate(gidx < n_elems)
    else:
        # Exact fit: every tile with tile_idx < num_tiles is full and valid;
        # tiles past num_tiles (odd split across cores) do nothing.
        @pl.when(tile_idx < num_tiles)
        def _all():
            _accumulate()


def dice_loss(inputs, targets, smooth=1.0):
    """Pallas TPU implementation of DiceLoss.forward."""
    x = jnp.reshape(inputs, (-1,))    # keep native dtype; cast in-kernel
    t = jnp.reshape(targets, (-1,))
    n = x.shape[0]

    # Lane alignment so the contiguous 1D -> (rows, 128) reshape is legal.
    n_lane = _round_up(n, LANES)
    if n_lane != n:
        x = jnp.pad(x, (0, n_lane - n))
        t = jnp.pad(t, (0, n_lane - n))
    rows = n_lane // LANES

    # Multiple of 32 sublanes: safe for f32 / bf16 / int8 target packing.
    tile_rows = min(MAX_TILE_ROWS, _round_up(rows, 32))

    x2 = x.reshape(rows, LANES)
    t2 = t.reshape(rows, LANES)
    if rows < tile_rows:
        # Tiny inputs: keep the block no larger than the array's leading dim.
        x2 = jnp.pad(x2, ((0, tile_rows - rows), (0, 0)))
        t2 = jnp.pad(t2, ((0, tile_rows - rows), (0, 0)))
        rows = tile_rows

    num_tiles = _cdiv(rows, tile_rows)
    tiles_per_core = _cdiv(num_tiles, NUM_CORES)
    needs_mask = (num_tiles * tile_rows * LANES) != n

    def in_map(c, i):
        # Clamp so the (possibly empty) trailing tiles of the second core
        # never DMA out of bounds; their accumulation is gated off in-kernel.
        return (jnp.minimum(c * tiles_per_core + i, num_tiles - 1), 0)

    def out_map(c, i):
        return (c, 0)   # per-core partial-sum block, resident across axis 1

    kernel = functools.partial(
        _dice_kernel,
        n_elems=n,
        tile_rows=tile_rows,
        tiles_per_core=tiles_per_core,
        num_tiles=num_tiles,
        needs_mask=needs_mask,
    )

    inter_p, denom_p = pl.pallas_call(
        kernel,
        out_shape=(
            jax.ShapeDtypeStruct((NUM_CORES * SUBLANES, LANES), jnp.float32),
            jax.ShapeDtypeStruct((NUM_CORES * SUBLANES, LANES), jnp.float32),
        ),
        grid_spec=pltpu.PrefetchScalarGridSpec(
            num_scalar_prefetch=0,
            grid=(NUM_CORES, tiles_per_core),
            in_specs=[
                pl.BlockSpec((tile_rows, LANES), in_map),
                pl.BlockSpec((tile_rows, LANES), in_map),
            ],
            out_specs=[
                pl.BlockSpec((SUBLANES, LANES), out_map),
                pl.BlockSpec((SUBLANES, LANES), out_map),
            ],
        ),
        compiler_params=pltpu.CompilerParams(
            dimension_semantics=("parallel", "arbitrary"),
            vmem_limit_bytes=32 * 1024 * 1024,
        ),
    )(x2, t2)

    # Tiny final combine in plain JAX (2 x 8 x 128 elements per array).
    inter = jnp.sum(inter_p)
    denom = jnp.sum(denom_p)
    dice = (2.0 * inter + smooth) / (denom + smooth)
    return 1.0 - dice


def dice_loss_ref(inputs, targets, smooth=1.0):
    s = jax.nn.sigmoid(inputs.astype(jnp.float32)).reshape(-1)
    t = targets.astype(jnp.float32).reshape(-1)
    inter = jnp.sum(s * t)
    dice = (2.0 * inter + smooth) / (jnp.sum(s) + jnp.sum(t) + smooth)
    return 1.0 - dice


if __name__ == "__main__":
    key = jax.random.PRNGKey(0)
    k1, k2, k3, k4, k5, k6 = jax.random.split(key, 6)

    # 1) Segmentation-head shape: N=2, C=4, H=W=16 (2048 elements).
    x1 = jax.random.normal(k1, (2, 4, 16, 16), dtype=jnp.float32)
    t1 = (jax.random.uniform(k2, (2, 4, 16, 16)) > 0.5).astype(jnp.float32)
    out1 = jax.block_until_ready(dice_loss(x1, t1, smooth=1.0))
    ref1 = dice_loss_ref(x1, t1, 1.0)
    assert jnp.allclose(out1, ref1, atol=1e-5, rtol=1e-5), (out1, ref1)

    # 2) Tiny ragged input (block larger than rows, lane pad masked).
    x2 = jax.random.normal(k3, (40,), dtype=jnp.float32)
    t2 = (jax.random.uniform(k4, (40,)) > 0.5).astype(jnp.float32)
    out2 = jax.block_until_ready(dice_loss(x2, t2, smooth=1.0))
    ref2 = dice_loss_ref(x2, t2, 1.0)
    assert jnp.allclose(out2, ref2, atol=1e-5, rtol=1e-5), (out2, ref2)

    # 3) Multi-tile ragged input: exercises both the 2-way core split and the
    #    masked partial trailing block (review correctness concern).
    x3 = jax.random.normal(k5, (2, 4, 183, 183), dtype=jnp.float32)
    t3 = (jax.random.uniform(k6, (2, 4, 183, 183)) > 0.5).astype(jnp.float32)
    out3 = jax.block_until_ready(dice_loss(x3, t3, smooth=1.0))
    ref3 = dice_loss_ref(x3, t3, 1.0)
    assert jnp.allclose(out3, ref3, atol=1e-5, rtol=1e-5), (out3, ref3)

    print("KERNEL_OK")
</pallas_src>

<mosaic_0001>
module attributes {stable_mosaic.version = 11 : i64} {
  func.func @_dice_kernel(%arg0: i32, %arg1: i32, %arg2: memref<32x128xf32, #tpu.memory_space<vmem>>, %arg3: memref<32x128xf32, #tpu.memory_space<vmem>>, %arg4: memref<8x128xf32, #tpu.memory_space<vmem>>, %arg5: memref<8x128xf32, #tpu.memory_space<vmem>>) attributes {dimension_semantics = [#tpu.dimension_semantics<parallel>, #tpu.dimension_semantics<arbitrary>], iteration_bounds = array<i64: 2, 1>, scalar_prefetch = 0 : i64, scratch_operands = 0 : i64, tpu.core_type = #tpu.core_type<tc>, window_params = [{transform_indices = @transform_0, window_bounds = array<i64: 32, 128>}, {transform_indices = @transform_1, window_bounds = array<i64: 32, 128>}, {transform_indices = @transform_2, window_bounds = array<i64: 8, 128>}, {transform_indices = @transform_3, window_bounds = array<i64: 8, 128>}]} {
    %c1_i32 = arith.constant 1 : i32
    %0 = arith.muli %arg0, %c1_i32 : i32
    %1 = arith.addi %0, %arg1 : i32
    %c0_i32 = arith.constant 0 : i32
    %2 = arith.cmpi eq, %arg1, %c0_i32 : i32
    %3 = arith.extui %2 : i1 to i32
    %c0_i32_0 = arith.constant 0 : i32
    %4 = arith.cmpi ne, %3, %c0_i32_0 : i32
    scf.if %4 {
      %cst = arith.constant 0.000000e+00 : f32
      %11 = vector.broadcast %cst : f32 to vector<8x128xf32>
      %c0 = arith.constant 0 : index
      %c0_5 = arith.constant 0 : index
      %12 = vector.load %arg4[%c0, %c0_5] : memref<8x128xf32, #tpu.memory_space<vmem>>, vector<8x128xf32>
      tpu.vector_store %arg4[%c0, %c0_5], %11 {strides = array<i32>} : memref<8x128xf32, #tpu.memory_space<vmem>>, vector<8x128xf32>,
      %cst_6 = arith.constant 0.000000e+00 : f32
      %13 = vector.broadcast %cst_6 : f32 to vector<8x128xf32>
      %c0_7 = arith.constant 0 : index
      %c0_8 = arith.constant 0 : index
      %14 = vector.load %arg5[%c0_7, %c0_8] : memref<8x128xf32, #tpu.memory_space<vmem>>, vector<8x128xf32>
      tpu.vector_store %arg5[%c0_7, %c0_8], %13 {strides = array<i32>} : memref<8x128xf32, #tpu.memory_space<vmem>>, vector<8x128xf32>,
    } else {
    }
    %c0_i32_1 = arith.constant 0 : i32
    %5 = arith.cmpi slt, %1, %c0_i32_1 : i32
    %6 = arith.extui %5 : i1 to i32
    %c0_i32_2 = arith.constant 0 : i32
    %7 = arith.cmpi ne, %6, %c0_i32_2 : i32
    scf.if %7 {
      %c0 = arith.constant 0 : index
      %c0_5 = arith.constant 0 : index
      %11 = vector.load %arg2[%c0, %c0_5] : memref<32x128xf32, #tpu.memory_space<vmem>>, vector<32x128xf32>
      %c0_6 = arith.constant 0 : index
      %c0_7 = arith.constant 0 : index
      %12 = vector.load %arg3[%c0_6, %c0_7] : memref<32x128xf32, #tpu.memory_space<vmem>>, vector<32x128xf32>
      %13 = arith.negf %11 : vector<32x128xf32>
      %14 = math.exp %13 : vector<32x128xf32>
      %cst = arith.constant 1.000000e+00 : f32
      %15 = vector.broadcast %cst : f32 to vector<32x128xf32>
      %16 = arith.addf %15, %14 : vector<32x128xf32>
      %17 = arith.divf %15, %16 : vector<32x128xf32>
      %c0_8 = arith.constant 0 : index
      %c0_9 = arith.constant 0 : index
      %18 = vector.load %arg4[%c0_8, %c0_9] : memref<8x128xf32, #tpu.memory_space<vmem>>, vector<8x128xf32>
      %19 = arith.mulf %17, %12 : vector<32x128xf32>
      %20 = vector.shape_cast %19 : vector<32x128xf32> to vector<4x8x128xf32>
      %cst_10 = arith.constant dense<0.000000e+00> : vector<8x128xf32>
      %21 = vector.multi_reduction <add>, %20, %cst_10 [0] : vector<4x8x128xf32> to vector<8x128xf32>
      %22 = arith.addf %18, %21 : vector<8x128xf32>
      %c0_11 = arith.constant 0 : index
      %c0_12 = arith.constant 0 : index
      %23 = vector.load %arg4[%c0_11, %c0_12] : memref<8x128xf32, #tpu.memory_space<vmem>>, vector<8x128xf32>
      tpu.vector_store %arg4[%c0_11, %c0_12], %22 {strides = array<i32>} : memref<8x128xf32, #tpu.memory_space<vmem>>, vector<8x128xf32>,
      %c0_13 = arith.constant 0 : index
      %c0_14 = arith.constant 0 : index
      %24 = vector.load %arg5[%c0_13, %c0_14] : memref<8x128xf32, #tpu.memory_space<vmem>>, vector<8x128xf32>
      %25 = arith.addf %17, %12 : vector<32x128xf32>
      %26 = vector.shape_cast %25 : vector<32x128xf32> to vector<4x8x128xf32>
      %cst_15 = arith.constant dense<0.000000e+00> : vector<8x128xf32>
      %27 = vector.multi_reduction <add>, %26, %cst_15 [0] : vector<4x8x128xf32> to vector<8x128xf32>
      %28 = arith.addf %24, %27 : vector<8x128xf32>
      %c0_16 = arith.constant 0 : index
      %c0_17 = arith.constant 0 : index
      %29 = vector.load %arg5[%c0_16, %c0_17] : memref<8x128xf32, #tpu.memory_space<vmem>>, vector<8x128xf32>
      tpu.vector_store %arg5[%c0_16, %c0_17], %28 {strides = array<i32>} : memref<8x128xf32, #tpu.memory_space<vmem>>, vector<8x128xf32>,
    } else {
    }
    %c0_i32_3 = arith.constant 0 : i32
    %8 = arith.cmpi eq, %1, %c0_i32_3 : i32
    %9 = arith.extui %8 : i1 to i32
    %c0_i32_4 = arith.constant 0 : i32
    %10 = arith.cmpi ne, %9, %c0_i32_4 : i32
    scf.if %10 {
      %11 = tpu.iota {dimensions = array<i32: 0>} : vector<32x128xi32>
      %12 = tpu.iota {dimensions = array<i32: 1>} : vector<32x128xi32>
      %c0_i32_5 = arith.constant 0 : i32
      %13 = vector.broadcast %c0_i32_5 : i32 to vector<32x128xi32>
      %14 = arith.addi %13, %11 : vector<32x128xi32>
      %c128_i32 = arith.constant 128 : i32
      %15 = vector.broadcast %c128_i32 : i32 to vector<32x128xi32>
      %16 = arith.muli %14, %15 : vector<32x128xi32>
      %17 = arith.addi %16, %12 : vector<32x128xi32>
      %c2048_i32 = arith.constant 2048 : i32
      %18 = vector.broadcast %c2048_i32 : i32 to vector<32x128xi32>
      %19 = arith.cmpi slt, %17, %18 : vector<32x128xi32>
      %c0 = arith.constant 0 : index
      %c0_6 = arith.constant 0 : index
      %20 = vector.load %arg2[%c0, %c0_6] : memref<32x128xf32, #tpu.memory_space<vmem>>, vector<32x128xf32>
      %c0_7 = arith.constant 0 : index
      %c0_8 = arith.constant 0 : index
      %21 = vector.load %arg3[%c0_7, %c0_8] : memref<32x128xf32, #tpu.memory_space<vmem>>, vector<32x128xf32>
      %22 = arith.negf %20 : vector<32x128xf32>
      %23 = math.exp %22 : vector<32x128xf32>
      %cst = arith.constant 1.000000e+00 : f32
      %24 = vector.broadcast %cst : f32 to vector<32x128xf32>
      %25 = arith.addf %24, %23 : vector<32x128xf32>
      %26 = arith.divf %24, %25 : vector<32x128xf32>
      %cst_9 = arith.constant 0.000000e+00 : f32
      %27 = vector.broadcast %cst_9 : f32 to vector<32x128xf32>
      %28 = arith.select %19, %26, %27 : vector<32x128xi1>, vector<32x128xf32>
      %cst_10 = arith.constant 0.000000e+00 : f32
      %29 = vector.broadcast %cst_10 : f32 to vector<32x128xf32>
      %30 = arith.select %19, %21, %29 : vector<32x128xi1>, vector<32x128xf32>
      %c0_11 = arith.constant 0 : index
      %c0_12 = arith.constant 0 : index
      %31 = vector.load %arg4[%c0_11, %c0_12] : memref<8x128xf32, #tpu.memory_space<vmem>>, vector<8x128xf32>
      %32 = arith.mulf %28, %30 : vector<32x128xf32>
      %33 = vector.shape_cast %32 : vector<32x128xf32> to vector<4x8x128xf32>
      %cst_13 = arith.constant dense<0.000000e+00> : vector<8x128xf32>
      %34 = vector.multi_reduction <add>, %33, %cst_13 [0] : vector<4x8x128xf32> to vector<8x128xf32>
      %35 = arith.addf %31, %34 : vector<8x128xf32>
      %c0_14 = arith.constant 0 : index
      %c0_15 = arith.constant 0 : index
      %36 = vector.load %arg4[%c0_14, %c0_15] : memref<8x128xf32, #tpu.memory_space<vmem>>, vector<8x128xf32>
      tpu.vector_store %arg4[%c0_14, %c0_15], %35 {strides = array<i32>} : memref<8x128xf32, #tpu.memory_space<vmem>>, vector<8x128xf32>,
      %c0_16 = arith.constant 0 : index
      %c0_17 = arith.constant 0 : index
      %37 = vector.load %arg5[%c0_16, %c0_17] : memref<8x128xf32, #tpu.memory_space<vmem>>, vector<8x128xf32>
      %38 = arith.addf %28, %30 : vector<32x128xf32>
      %39 = vector.shape_cast %38 : vector<32x128xf32> to vector<4x8x128xf32>
      %cst_18 = arith.constant dense<0.000000e+00> : vector<8x128xf32>
      %40 = vector.multi_reduction <add>, %39, %cst_18 [0] : vector<4x8x128xf32> to vector<8x128xf32>
      %41 = arith.addf %37, %40 : vector<8x128xf32>
      %c0_19 = arith.constant 0 : index
      %c0_20 = arith.constant 0 : index
      %42 = vector.load %arg5[%c0_19, %c0_20] : memref<8x128xf32, #tpu.memory_space<vmem>>, vector<8x128xf32>
      tpu.vector_store %arg5[%c0_19, %c0_20], %41 {strides = array<i32>} : memref<8x128xf32, #tpu.memory_space<vmem>>, vector<8x128xf32>,
    } else {
    }
    return
  }
  func.func @transform_0(%arg0: i32, %arg1: i32) -> (i32, i32) {
    %c1_i32 = arith.constant 1 : i32
    %0 = arith.muli %arg0, %c1_i32 : i32
    %1 = arith.addi %0, %arg1 : i32
    %c0_i32 = arith.constant 0 : i32
    %2 = arith.minsi %1, %c0_i32 : i32
    %c0_i32_0 = arith.constant 0 : i32
    %c0_i32_1 = arith.constant 0 : i32
    return %2, %c0_i32_0 : i32, i32
  }
  func.func @transform_1(%arg0: i32, %arg1: i32) -> (i32, i32) {
    %c1_i32 = arith.constant 1 : i32
    %0 = arith.muli %arg0, %c1_i32 : i32
    %1 = arith.addi %0, %arg1 : i32
    %c0_i32 = arith.constant 0 : i32
    %2 = arith.minsi %1, %c0_i32 : i32
    %c0_i32_0 = arith.constant 0 : i32
    %c0_i32_1 = arith.constant 0 : i32
    return %2, %c0_i32_0 : i32, i32
  }
  func.func @transform_2(%arg0: i32, %arg1: i32) -> (i32, i32) {
    %c0_i32 = arith.constant 0 : i32
    %c0_i32_0 = arith.constant 0 : i32
    return %arg0, %c0_i32 : i32, i32
  }
  func.func @transform_3(%arg0: i32, %arg1: i32) -> (i32, i32) {
    %c0_i32 = arith.constant 0 : i32
    %c0_i32_0 = arith.constant 0 : i32
    return %arg0, %c0_i32 : i32, i32
  }
}

</mosaic_0001>

<llo_original>
// kernel: tpu_custom_call.1
$region0: #{tpu_custom_call.1}
  #allocation0 [shape = 'u32[]', space=smem, size = 0x4, offset = 0x4, fixed_abs, tag = 'smem constant byte address 0x4 - core index']
  #allocation1 [shape = 'u32[144,128]{1,0:T(1,128)}', space=vmem, size = 0x12000, scoped, tag = 'internal scratch']
  %s0 = inlined_call_operand.hbm [shape: f32[32,128], index: 0, kind: input, shape index: {}]
  %s1 = inlined_call_operand.hbm [shape: f32[32,128], index: 1, kind: input, shape index: {}]
  %s2 = inlined_call_operand.hbm [shape: f32[16,128], index: 2, kind: output, shape index: {0}]
  %s3 = inlined_call_operand.hbm [shape: f32[16,128], index: 3, kind: output, shape index: {1}]
  %4 = xla_tuple %s2, %s3
  %s5 = sld [smem:[#allocation0]]
  $region69: #{tpu_custom_call.1} parent=0
    _
  %s7 = ssub.s32 1, %s5
  %s8 = scalar_select 0, %s7, %s5
  $region1: #{tpu_custom_call.1} parent=0
    #allocation2 [shape = 'u8[32768]{0}', space=vmem, size = 0x8000, scoped, tag = 'input window, operand 0']
    #allocation3 [shape = 's32[2]{0}', space=sflag, size = 0x8, scoped, tag = 'scoped memory for tpu_custom_call.1']
    #allocation4 [shape = 's32[2]{0}', space=sflag, size = 0x8, scoped, tag = 'scoped memory for tpu_custom_call.1']
    #allocation5 [shape = 'u8[32768]{0}', space=vmem, size = 0x8000, scoped, tag = 'input window, operand 1']
    #allocation6 [shape = 's32[2]{0}', space=sflag, size = 0x8, scoped, tag = 'scoped memory for tpu_custom_call.1']
    #allocation7 [shape = 'u8[8192]{0}', space=vmem, size = 0x2000, scoped, tag = 'output window, operand 0']
    #allocation8 [shape = 'u8[8192]{0}', space=vmem, size = 0x2000, scoped, tag = 'output window, operand 1']
    #allocation9 [shape = 's32[2]{0}', space=sflag, size = 0x8, scoped, tag = 'scoped memory for tpu_custom_call.1']
    %9 = vsyncpa [#allocation3], 0
    %s10 = scalar_lea.sflag [#allocation3], 1
    %11 = vsyncpa %s10, 0
    %12 = vsyncpa [#allocation6], 0
    %s13 = scalar_lea.sflag [#allocation6], 1
    %14 = vsyncpa %s13, 0
    %15 = vsyncpa [#allocation4], 0
    %s16 = scalar_lea.sflag [#allocation4], 1
    %17 = vsyncpa %s16, 0
    %18 = vsyncpa [#allocation9], 0
    %s19 = scalar_lea.sflag [#allocation9], 1
    %20 = vsyncpa %s19, 0
    loop: start=0, step=1, limit=4
    $region2: #{tpu_custom_call.1} parent=1 // loop_pre_header
      _
    $region3: #{tpu_custom_call.1} parent=1 // loop_header
      %s22 = sphi 0, %s26
      %p23 = scmp.ge.s32.totalorder %s22, 4
      %s29 = sphi 0, %s41
      %s30 = sphi 0, %s37
      %s31 = sphi 0, %s29
      %s32 = sphi 0, %s30
      %s33 = sphi 0, %s31
      %s34 = sphi 0, %s32
      %s50 = sphi 0, %s52
      %s53 = sphi 0, %s50
      %s54 = sphi 0, %s53
      %s70 = sphi 0, %s54
      %s82 = sphi 0, %s84
      %s85 = sphi 0, %s82
      %s86 = sphi 0, %s85
      %s102 = sphi 0, %s86
      %s108 = sphi 0, %s110
      %s111 = sphi 0, %s108
      %s112 = sphi 0, %s111
      %s128 = sphi 0, %s112
      %s134 = sphi 0, %s136
      %s137 = sphi 0, %s134
      %s138 = sphi 0, %s137
      %s154 = sphi 0, %s138
    $region4: #{tpu_custom_call.1} parent=1 // loop_header_branch
      %25 = sbr.rel (%p23) target = $region8
    $region5: #{tpu_custom_call.1} parent=1 // loop_body
      %s27 = ssub.s32 %s22, 1
      %s28 = ssub.s32 %s22, 2
      %s35 = sadd.s32 1, %s30
      %p36 = scmp.ge.s32.totalorder %s35, 1
      %s37 = scalar_select %p36, 0, %s35
      %s38 = sadd.s32 1, %s29
      %s39 = scalar_select %p36, %s38, %s29
      %p40 = scmp.ge.s32.totalorder %s39, 2
      %s41 = scalar_select %p40, 0, %s39
      %s42 = sadd.s32 %s29, %s30
      %p43 = scmp.lt.s32.totalorder %s42, 0
      %s44 = scalar_select %p43, %s42, 0
      %s45 = sadd.s32 %s41, %s37
      %p46 = scmp.lt.s32.totalorder %s45, 0
      %s47 = scalar_select %p46, %s45, 0
      %s48 = ssub.s32 %s44, %s47
      %p49 = scmp.eq.s32.totalorder %s48, 0
      %s51 = sadd.s32 %s50, 1
      %s52 = scalar_select %p49, %s50, %s51
      %p55 = pneg %p49
      %p56 = scmp.eq.s32.totalorder %s22, 1
      %p57 = por %p55, %p56
      %p58 = scmp.ne.s32.totalorder %s50, %s53
      %p59 = scmp.eq.s32.totalorder %s22, 0
      %p60 = por %p58, %p59
      %p61 = scmp.ne.s32.totalorder %s50, %s53
      %p62 = scmp.eq.s32.totalorder %s27, 1
      %p63 = por %p61, %p62
      %p64 = scmp.ne.s32.totalorder %s53, %s54
      %p65 = scmp.eq.s32.totalorder %s27, 0
      %p66 = por %p64, %p65
      %p67 = scmp.ne.s32.totalorder %s53, %s54
      %p68 = scmp.eq.s32.totalorder %s28, 1
      %p69 = por %p67, %p68
      %p71 = scmp.ne.s32.totalorder %s54, %s70
      %p72 = scmp.eq.s32.totalorder %s28, 0
      %p73 = por %p71, %p72
      %s74 = sadd.s32 %s29, %s30
      %p75 = scmp.lt.s32.totalorder %s74, 0
      %s76 = scalar_select %p75, %s74, 0
      %s77 = sadd.s32 %s41, %s37
      %p78 = scmp.lt.s32.totalorder %s77, 0
      %s79 = scalar_select %p78, %s77, 0
      %s80 = ssub.s32 %s76, %s79
      %p81 = scmp.eq.s32.totalorder %s80, 0
      %s83 = sadd.s32 %s82, 1
      %s84 = scalar_select %p81, %s82, %s83
      %p87 = pneg %p81
      %p88 = scmp.eq.s32.totalorder %s22, 1
      %p89 = por %p87, %p88
      %p90 = scmp.ne.s32.totalorder %s82, %s85
      %p91 = scmp.eq.s32.totalorder %s22, 0
      %p92 = por %p90, %p91
      %p93 = scmp.ne.s32.totalorder %s82, %s85
      %p94 = scmp.eq.s32.totalorder %s27, 1
      %p95 = por %p93, %p94
      %p96 = scmp.ne.s32.totalorder %s85, %s86
      %p97 = scmp.eq.s32.totalorder %s27, 0
      %p98 = por %p96, %p97
      %p99 = scmp.ne.s32.totalorder %s85, %s86
      %p100 = scmp.eq.s32.totalorder %s28, 1
      %p101 = por %p99, %p100
      %p103 = scmp.ne.s32.totalorder %s86, %s102
      %p104 = scmp.eq.s32.totalorder %s28, 0
      %p105 = por %p103, %p104
      %s106 = ssub.s32 %s29, %s41
      %p107 = scmp.eq.s32.totalorder %s106, 0
      %s109 = sadd.s32 %s108, 1
      %s110 = scalar_select %p107, %s108, %s109
      %p113 = pneg %p107
      %p114 = scmp.eq.s32.totalorder %s22, 1
      %p115 = por %p113, %p114
      %p116 = scmp.ne.s32.totalorder %s108, %s111
      %p117 = scmp.eq.s32.totalorder %s22, 0
      %p118 = por %p116, %p117
      %p119 = scmp.ne.s32.totalorder %s108, %s111
      %p120 = scmp.eq.s32.totalorder %s27, 1
      %p121 = por %p119, %p120
      %p122 = scmp.ne.s32.totalorder %s111, %s112
      %p123 = scmp.eq.s32.totalorder %s27, 0
      %p124 = por %p122, %p123
      %p125 = scmp.ne.s32.totalorder %s111, %s112
      %p126 = scmp.eq.s32.totalorder %s28, 1
      %p127 = por %p125, %p126
      %p129 = scmp.ne.s32.totalorder %s112, %s128
      %p130 = scmp.eq.s32.totalorder %s28, 0
      %p131 = por %p129, %p130
      %s132 = ssub.s32 %s29, %s41
      %p133 = scmp.eq.s32.totalorder %s132, 0
      %s135 = sadd.s32 %s134, 1
      %s136 = scalar_select %p133, %s134, %s135
      %p139 = pneg %p133
      %p140 = scmp.eq.s32.totalorder %s22, 1
      %p141 = por %p139, %p140
      %p142 = scmp.ne.s32.totalorder %s134, %s137
      %p143 = scmp.eq.s32.totalorder %s22, 0
      %p144 = por %p142, %p143
      %p145 = scmp.ne.s32.totalorder %s134, %s137
      %p146 = scmp.eq.s32.totalorder %s27, 1
      %p147 = por %p145, %p146
      %p148 = scmp.ne.s32.totalorder %s137, %s138
      %p149 = scmp.eq.s32.totalorder %s27, 0
      %p150 = por %p148, %p149
      %p151 = scmp.ne.s32.totalorder %s137, %s138
      %p152 = scmp.eq.s32.totalorder %s28, 1
      %p153 = por %p151, %p152
      %p155 = scmp.ne.s32.totalorder %s138, %s154
      %p156 = scmp.eq.s32.totalorder %s28, 0
      %p157 = por %p155, %p156
      %p158 = scmp.le.s32.totalorder 1, %s22
      %p159 = scmp.lt.s32.totalorder %s22, 3
      %p160 = pnand %p158, %p159
      %p161 = pneg %p160
      // Predicated region
      $region9: #{tpu_custom_call.1} parent=5 // pred_check
        _
      $region10: #{tpu_custom_call.1} parent=5 // pred_check_branch
        %163 = sbr.rel (%p160) target = $region12
      $region11: #{tpu_custom_call.1} parent=5 // pred_region
        %s164 = ssub.s32 %s22, 1
      $region12: #{tpu_custom_call.1} parent=5 // pred_fallthru
        _
      %p165 = scmp.lt.s32.totalorder %s22, 2
      // Predicated region
      $region13: #{tpu_custom_call.1} parent=5 // pred_check
        %p166 = pneg %p165
      $region14: #{tpu_custom_call.1} parent=5 // pred_check_branch
        %168 = sbr.rel (%p166) target = $region16
      $region15: #{tpu_custom_call.1} parent=5 // pred_region
        // Predicated region
        $region17: #{tpu_custom_call.1} parent=15 // pred_check
          %p169 = pneg %p60
        $region18: #{tpu_custom_call.1} parent=15 // pred_check_branch
          %171 = sbr.rel (%p169) target = $region20
        $region19: #{tpu_custom_call.1} parent=15 // pred_region
          %s172 = sand.u32 %s50, 1
          %s173 = scalar_lea.sflag [#allocation3], %s172
          %s174 = sand.u32 %s50, 1
          %s175 = smul.addr %s174, 32
          %s176 = scalar_lea.vmem [#allocation2], %s175
          %s177 = sadd.s32 %s29, %s30
          %p178 = scmp.lt.s32.totalorder %s177, 0
          %s179 = scalar_select %p178, %s177, 0
          %s180 = smul.u32 4, %s179
          %s182 = ssub.s32 512, 512
          %183 = vsyncadd %s173, %s182
          %s184 = smul.addr %s180, 128
          %s185 = scalar_lea.hbm %s0, %s184
          %s186 = sshll.u32 %s176, 4
          %s187 = int_to_ptr.vmem [resolvable:$true] %s186
          %192 = dma.hbm_to_vmem [thread:$0]  %s185, 512, %s187, %s173, 128, 128, 8
        $region20: #{tpu_custom_call.1} parent=15 // pred_fallthru
          _
        // Predicated region
        $region21: #{tpu_custom_call.1} parent=15 // pred_check
          %p193 = pneg %p92
        $region22: #{tpu_custom_call.1} parent=15 // pred_check_branch
          %195 = sbr.rel (%p193) target = $region24
        $region23: #{tpu_custom_call.1} parent=15 // pred_region
          %s196 = sand.u32 %s82, 1
          %s197 = scalar_lea.sflag [#allocation6], %s196
          %s198 = sand.u32 %s82, 1
          %s199 = smul.addr %s198, 32
          %s200 = scalar_lea.vmem [#allocation5], %s199
          %s201 = sadd.s32 %s29, %s30
          %p202 = scmp.lt.s32.totalorder %s201, 0
          %s203 = scalar_select %p202, %s201, 0
          %s204 = smul.u32 4, %s203
          %s206 = ssub.s32 512, 512
          %207 = vsyncadd %s197, %s206
          %s208 = smul.addr %s204, 128
          %s209 = scalar_lea.hbm %s1, %s208
          %s210 = sshll.u32 %s200, 4
          %s211 = int_to_ptr.vmem [resolvable:$true] %s210
          %216 = dma.hbm_to_vmem [thread:$0]  %s209, 512, %s211, %s197, 128, 128, 8
        $region24: #{tpu_custom_call.1} parent=15 // pred_fallthru
          _
      $region16: #{tpu_custom_call.1} parent=5 // pred_fallthru
        _
      %p217 = scmp.le.s32.totalorder 1, %s22
      %p218 = scmp.lt.s32.totalorder %s22, 3
      %p219 = pnand %p217, %p218
      %p220 = pneg %p219
      // Predicated region
      $region25: #{tpu_custom_call.1} parent=5 // pred_check
        _
      $region26: #{tpu_custom_call.1} parent=5 // pred_check_branch
        %222 = sbr.rel (%p219) target = $region28
      $region27: #{tpu_custom_call.1} parent=5 // pred_region
        %s223 = ssub.s32 %s22, 1
        %s224 = sand.u32 %s53, 1
        %s225 = scalar_lea.sflag [#allocation3], %s224
        %s226 = sand.u32 %s53, 1
        %s227 = smul.addr %s226, 32
        %s228 = scalar_lea.vmem [#allocation2], %s227
        // Predicated region
        $region29: #{tpu_custom_call.1} parent=27 // pred_check
          %p229 = pneg %p66
        $region30: #{tpu_custom_call.1} parent=27 // pred_check_branch
          %231 = sbr.rel (%p229) target = $region32
        $region31: #{tpu_custom_call.1} parent=27 // pred_region
          %232 = dma.done %s225, 512
        $region32: #{tpu_custom_call.1} parent=27 // pred_fallthru
          _
        %s233 = sand.u32 %s85, 1
        %s234 = scalar_lea.sflag [#allocation6], %s233
        %s235 = sand.u32 %s85, 1
        %s236 = smul.addr %s235, 32
        %s237 = scalar_lea.vmem [#allocation5], %s236
        // Predicated region
        $region33: #{tpu_custom_call.1} parent=27 // pred_check
          %p238 = pneg %p98
        $region34: #{tpu_custom_call.1} parent=27 // pred_check_branch
          %240 = sbr.rel (%p238) target = $region36
        $region35: #{tpu_custom_call.1} parent=27 // pred_region
          %241 = dma.done %s234, 512
        $region36: #{tpu_custom_call.1} parent=27 // pred_fallthru
          _
        %s242 = sand.u32 %s53, 1
        %s243 = scalar_lea.sflag [#allocation3], %s242
        %s244 = sand.u32 %s53, 1
        %s245 = smul.addr %s244, 32
        %s246 = scalar_lea.vmem [#allocation2], %s245
        %p247 = pneg %p66
        %p248 = pneg %p63
        %s249 = sand.u32 %s85, 1
        %s250 = scalar_lea.sflag [#allocation6], %s249
        %s251 = sand.u32 %s85, 1
        %s252 = smul.addr %s251, 32
        %s253 = scalar_lea.vmem [#allocation5], %s252
        %p254 = pneg %p98
        %p255 = pneg %p95
        %p256 = pneg %p124
        %p257 = pneg %p121
        %s258 = sand.u32 %s111, 1
        %s259 = scalar_lea.sflag [#allocation4], %s258
        %s260 = sand.u32 %s111, 1
        %s261 = smul.addr %s260, 8
        %s262 = scalar_lea.vmem [#allocation7], %s261
        %p263 = pneg %p150
        %p264 = pneg %p147
        %s265 = sand.u32 %s137, 1
        %s266 = scalar_lea.sflag [#allocation9], %s265
        %s267 = sand.u32 %s137, 1
        %s268 = smul.addr %s267, 8
        %s269 = scalar_lea.vmem [#allocation8], %s268
        %s270 = sadd.s32 %s31, %s32
        %p271 = scmp.lt.s32.totalorder %s270, 0
        %s272 = scalar_select %p271, %s270, 0
        %s273 = smul.u32 4, %s272
        %s274 = sadd.s32 %s31, %s32
        %p275 = scmp.lt.s32.totalorder %s274, 0
        %s276 = scalar_select %p275, %s274, 0
        %s277 = smul.u32 4, %s276
        %s278 = sadd.s32 %s31, %s32
        %p279 = scmp.eq.s32.totalorder %s32, 0
        // Predicated region
        $region37: #{tpu_custom_call.1} parent=27 // pred_check
          %p280 = pneg %p279
        $region38: #{tpu_custom_call.1} parent=27 // pred_check_branch
          %282 = sbr.rel (%p280) target = $region40
        $region39: #{tpu_custom_call.1} parent=27 // pred_region
          %283 = vst [vmem:[%s262] sm:$0xff] 0.0
          %284 = vst [vmem:[%s269] sm:$0xff] 0.0
        $region40: #{tpu_custom_call.1} parent=27 // pred_fallthru
          _
        %p285 = scmp.lt.s32.totalorder %s278, 0
        // Predicated region
        $region41: #{tpu_custom_call.1} parent=27 // pred_check
          %p286 = pneg %p285
        $region42: #{tpu_custom_call.1} parent=27 // pred_check_branch
          %288 = sbr.rel (%p286) target = $region44
        $region43: #{tpu_custom_call.1} parent=27 // pred_region
          %v289 = vld [vmem:[%s228] sm:$0xff]
          %v290 = vld [vmem:[%s228 + $0x8] sm:$0xff]
          %v291 = vld [vmem:[%s228 + $0x10] sm:$0xff]
          %v292 = vld [vmem:[%s228 + $0x18] sm:$0xff]
          %v293 = vld [vmem:[%s237] sm:$0xff]
          %v294 = vld [vmem:[%s237 + $0x8] sm:$0xff]
          %v295 = vld [vmem:[%s237 + $0x10] sm:$0xff]
          %v296 = vld [vmem:[%s237 + $0x18] sm:$0xff]
          %v297 = vxor.u32 %v289, 2147483648
          %v298 = vxor.u32 %v290, 2147483648
          %v299 = vxor.u32 %v291, 2147483648
          %v300 = vxor.u32 %v292, 2147483648
          %v301 = vmul.f32 %v297, 1.442695
          %v302 = vpow.pop %v301
          %v303 = vmul.f32 %v298, 1.442695
          %v304 = vpow.pop %v303
          %v305 = vmul.f32 %v299, 1.442695
          %v306 = vpow.pop %v305
          %v307 = vmul.f32 %v300, 1.442695
          %v308 = vpow.pop %v307
          %v309 = vadd.f32 %v302, 1.0
          %v310 = vadd.f32 %v304, 1.0
          %v311 = vadd.f32 %v306, 1.0
          %v312 = vadd.f32 %v308, 1.0
          %v313 = vrcp.pop %v309
          %v314 = vmul.f32 1.0, %v313
          %v315 = vrcp.pop %v310
          %v316 = vmul.f32 1.0, %v315
          %v317 = vrcp.pop %v311
          %v318 = vmul.f32 1.0, %v317
          %v319 = vrcp.pop %v312
          %v320 = vmul.f32 1.0, %v319
          %v321 = vld [vmem:[%s262] sm:$0xff]
          %v322 = vmul.f32 %v314, %v293
          %v323 = vmul.f32 %v316, %v294
          %v324 = vmul.f32 %v318, %v295
          %v325 = vmul.f32 %v320, %v296
          %v326 = vadd.f32 %v322, %v323
          %v327 = vadd.f32 %v326, %v324
          %v328 = vadd.f32 %v327, %v325
          %v329 = vadd.f32 %v321, %v328
          %330 = vst [vmem:[%s262] sm:$0xff] %v329
          %v331 = vld [vmem:[%s269] sm:$0xff]
          %v332 = vadd.f32 %v314, %v293
          %v333 = vadd.f32 %v316, %v294
          %v334 = vadd.f32 %v318, %v295
          %v335 = vadd.f32 %v320, %v296
          %v336 = vadd.f32 %v332, %v333
          %v337 = vadd.f32 %v336, %v334
          %v338 = vadd.f32 %v337, %v335
          %v339 = vadd.f32 %v331, %v338
          %340 = vst [vmem:[%s269] sm:$0xff] %v339
        $region44: #{tpu_custom_call.1} parent=27 // pred_fallthru
          _
        %p341 = scmp.eq.s32.totalorder %s278, 0
        // Predicated region
        $region45: #{tpu_custom_call.1} parent=27 // pred_check
          %p342 = pneg %p341
        $region46: #{tpu_custom_call.1} parent=27 // pred_check_branch
          %344 = sbr.rel (%p342) target = $region48
        $region47: #{tpu_custom_call.1} parent=27 // pred_region
          %v345 = vlaneseq
          %v346 = vshrl.u32 %v345, 7
          %v347 = vadd.s32 %v346, 8
          %v348 = vadd.s32 %v346, 16
          %v349 = vadd.s32 %v346, 24
          %v350 = vlaneseq
          %v351 = vand.u32 %v350, 127
          %v352 = vmul.u32 %v346, 128
          %v353 = vmul.u32 %v347, 128
          %v354 = vmul.u32 %v348, 128
          %v355 = vmul.u32 %v349, 128
          %v356 = vadd.s32 %v352, %v351
          %v357 = vadd.s32 %v353, %v351
          %v358 = vadd.s32 %v354, %v351
          %v359 = vadd.s32 %v355, %v351
          %vm360 = vcmp.lt.s32.totalorder %v356, 2048
          %vm361 = vcmp.lt.s32.totalorder %v357, 2048
          %vm362 = vcmp.lt.s32.totalorder %v358, 2048
          %vm363 = vcmp.lt.s32.totalorder %v359, 2048
          %v364 = vld [vmem:[%s228] sm:$0xff]
          %v365 = vld [vmem:[%s228 + $0x8] sm:$0xff]
          %v366 = vld [vmem:[%s228 + $0x10] sm:$0xff]
          %v367 = vld [vmem:[%s228 + $0x18] sm:$0xff]
          %v368 = vld [vmem:[%s237] sm:$0xff]
          %v369 = vld [vmem:[%s237 + $0x8] sm:$0xff]
          %v370 = vld [vmem:[%s237 + $0x10] sm:$0xff]
          %v371 = vld [vmem:[%s237 + $0x18] sm:$0xff]
          %v372 = vxor.u32 %v364, 2147483648
          %v373 = vxor.u32 %v365, 2147483648
          %v374 = vxor.u32 %v366, 2147483648
          %v375 = vxor.u32 %v367, 2147483648
          %v376 = vmul.f32 %v372, 1.442695
          %v377 = vpow.pop %v376
          %v378 = vmul.f32 %v373, 1.442695
          %v379 = vpow.pop %v378
          %v380 = vmul.f32 %v374, 1.442695
          %v381 = vpow.pop %v380
          %v382 = vmul.f32 %v375, 1.442695
          %v383 = vpow.pop %v382
          %v384 = vadd.f32 %v377, 1.0
          %v385 = vadd.f32 %v379, 1.0
          %v386 = vadd.f32 %v381, 1.0
          %v387 = vadd.f32 %v383, 1.0
          %v388 = vrcp.pop %v384
          %v389 = vmul.f32 1.0, %v388
          %v390 = vrcp.pop %v385
          %v391 = vmul.f32 1.0, %v390
          %v392 = vrcp.pop %v386
          %v393 = vmul.f32 1.0, %v392
          %v394 = vrcp.pop %v387
          %v395 = vmul.f32 1.0, %v394
          %v396 = vsel %vm360, %v389, 0.0
          %v397 = vsel %vm361, %v391, 0.0
          %v398 = vsel %vm362, %v393, 0.0
          %v399 = vsel %vm363, %v395, 0.0
          %v400 = vsel %vm360, %v368, 0.0
          %v401 = vsel %vm361, %v369, 0.0
          %v402 = vsel %vm362, %v370, 0.0
          %v403 = vsel %vm363, %v371, 0.0
          %v404 = vld [vmem:[%s262] sm:$0xff]
          %v405 = vmul.f32 %v396, %v400
          %v406 = vmul.f32 %v397, %v401
          %v407 = vmul.f32 %v398, %v402
          %v408 = vmul.f32 %v399, %v403
          %v409 = vadd.f32 %v405, %v406
          %v410 = vadd.f32 %v409, %v407
          %v411 = vadd.f32 %v410, %v408
          %v412 = vadd.f32 %v404, %v411
          %413 = vst [vmem:[%s262] sm:$0xff] %v412
          %v414 = vld [vmem:[%s269] sm:$0xff]
          %v415 = vadd.f32 %v396, %v400
          %v416 = vadd.f32 %v397, %v401
          %v417 = vadd.f32 %v398, %v402
          %v418 = vadd.f32 %v399, %v403
          %v419 = vadd.f32 %v415, %v416
          %v420 = vadd.f32 %v419, %v417
          %v421 = vadd.f32 %v420, %v418
          %v422 = vadd.f32 %v414, %v421
          %423 = vst [vmem:[%s269] sm:$0xff] %v422
        $region48: #{tpu_custom_call.1} parent=27 // pred_fallthru
          _
        %s424 = sand.u32 %s111, 1
        %s425 = scalar_lea.sflag [#allocation4], %s424
        %s426 = sand.u32 %s111, 1
        %s427 = smul.addr %s426, 8
        %s428 = scalar_lea.vmem [#allocation7], %s427
        %s429 = sand.u32 %s137, 1
        %s430 = scalar_lea.sflag [#allocation9], %s429
        %s431 = sand.u32 %s137, 1
        %s432 = smul.addr %s431, 8
        %s433 = scalar_lea.vmem [#allocation8], %s432
        // Predicated region
        $region49: #{tpu_custom_call.1} parent=27 // pred_check
          %p434 = pneg %p121
        $region50: #{tpu_custom_call.1} parent=27 // pred_check_branch
          %436 = sbr.rel (%p434) target = $region52
        $region51: #{tpu_custom_call.1} parent=27 // pred_region
          %s438 = ssub.s32 128, 128
          %439 = vsyncadd %s425, %s438
          %s440 = smul.addr %s31, 128
          %s441 = scalar_lea.hbm %s2, %s440
          %s443 = sshll.u32 %s428, 4
          %s444 = int_to_ptr.vmem [resolvable:$true] %s443
          %446 = dma.vmem_to_hbm [thread:$0]  %s444, 128, %s441, %s425
        $region52: #{tpu_custom_call.1} parent=27 // pred_fallthru
          _
        // Predicated region
        $region53: #{tpu_custom_call.1} parent=27 // pred_check
          %p447 = pneg %p147
        $region54: #{tpu_custom_call.1} parent=27 // pred_check_branch
          %449 = sbr.rel (%p447) target = $region56
        $region55: #{tpu_custom_call.1} parent=27 // pred_region
          %s451 = ssub.s32 128, 128
          %452 = vsyncadd %s430, %s451
          %s453 = smul.addr %s31, 128
          %s454 = scalar_lea.hbm %s3, %s453
          %s456 = sshll.u32 %s433, 4
          %s457 = int_to_ptr.vmem [resolvable:$true] %s456
          %459 = dma.vmem_to_hbm [thread:$0]  %s457, 128, %s454, %s430
        $region56: #{tpu_custom_call.1} parent=27 // pred_fallthru
          _
      $region28: #{tpu_custom_call.1} parent=5 // pred_fallthru
        _
      %p460 = scmp.le.s32.totalorder 2, %s22
      // Predicated region
      $region57: #{tpu_custom_call.1} parent=5 // pred_check
        %p461 = pneg %p460
      $region58: #{tpu_custom_call.1} parent=5 // pred_check_branch
        %463 = sbr.rel (%p461) target = $region60
      $region59: #{tpu_custom_call.1} parent=5 // pred_region
        %s464 = ssub.s32 %s22, 2
        // Predicated region
        $region61: #{tpu_custom_call.1} parent=59 // pred_check
          %p465 = pneg %p127
        $region62: #{tpu_custom_call.1} parent=59 // pred_check_branch
          %467 = sbr.rel (%p465) target = $region64
        $region63: #{tpu_custom_call.1} parent=59 // pred_region
          %s468 = sand.u32 %s112, 1
          %s469 = scalar_lea.sflag [#allocation4], %s468
          %s470 = sand.u32 %s112, 1
          %s471 = smul.addr %s470, 8
          %s472 = scalar_lea.vmem [#allocation7], %s471
          %473 = dma.done %s469, 128
        $region64: #{tpu_custom_call.1} parent=59 // pred_fallthru
          _
        // Predicated region
        $region65: #{tpu_custom_call.1} parent=59 // pred_check
          %p474 = pneg %p153
        $region66: #{tpu_custom_call.1} parent=59 // pred_check_branch
          %476 = sbr.rel (%p474) target = $region68
        $region67: #{tpu_custom_call.1} parent=59 // pred_region
          %s477 = sand.u32 %s138, 1
          %s478 = scalar_lea.sflag [#allocation9], %s477
          %s479 = sand.u32 %s138, 1
          %s480 = smul.addr %s479, 8
          %s481 = scalar_lea.vmem [#allocation8], %s480
          %482 = dma.done %s478, 128
        $region68: #{tpu_custom_call.1} parent=59 // pred_fallthru
          _
      $region60: #{tpu_custom_call.1} parent=5 // pred_fallthru
        _
    $region6: #{tpu_custom_call.1} parent=1 // loop_footer
      %s26 = sadd.s32 1, %s22
    $region7: #{tpu_custom_call.1} parent=1 // loop_footer_branch
      %21 = sbr.rel target = $region3
    $region8: #{tpu_custom_call.1} parent=1 // loop_exit
      _
    %483 = vsyncpa [#allocation3], 1
    %s484 = scalar_lea.sflag [#allocation3], 1
    %485 = vsyncpa %s484, 1
    %486 = vsyncpa [#allocation6], 1
    %s487 = scalar_lea.sflag [#allocation6], 1
    %488 = vsyncpa %s487, 1
    %489 = vsyncpa [#allocation4], 1
    %s490 = scalar_lea.sflag [#allocation4], 1
    %491 = vsyncpa %s490, 1
    %492 = vsyncpa [#allocation9], 1
    %s493 = scalar_lea.sflag [#allocation9], 1
    %494 = vsyncpa %s493, 1

</llo_original>
